<compile_context>
chip_gen: v5e
topology: v5e:2x2
jax: 0.10.0
libtpu: 0.0.40
codegen_flags: <defaults>
</compile_context>

<pallas_src>
import functools

import jax
import jax.numpy as jnp
from jax.experimental import pallas as pl
from jax.experimental.pallas import tpu as pltpu


def _round_up(n, m):
    return ((n + m - 1) // m) * m


# --------------------------------------------------------------------------- #
# Kernel
# --------------------------------------------------------------------------- #
def classifier_kernel(x_ref, w_ref, b_ref, o_ref, xn_ref):
    # LayerNorm (eps=1e-6) over the feature axis.  gamma/beta are folded into
    # w_ref/b_ref at prep time, so only the normalization runs here.  The
    # normalized tile is cached in VMEM scratch and reused for every class
    # tile (grid axis 1).
    @pl.when(pl.program_id(1) == 0)
    def _():
        x = x_ref[...].astype(jnp.float32)
        inv_d = jnp.float32(1.0 / x_ref.shape[-1])
        s1 = jnp.sum(x, axis=-1, keepdims=True)
        s2 = jnp.sum(x * x, axis=-1, keepdims=True)
        mean = s1 * inv_d
        var = jnp.maximum(s2 * inv_d - mean * mean, 0.0)
        xn = (x - mean) * jax.lax.rsqrt(var + 1e-6)
        xn_ref[...] = xn.astype(jnp.bfloat16)

    # Dropout(p=0.0) == identity.
    # Linear: bf16 operands into the MXU, f32 accumulation, f32 bias add.
    out = jnp.dot(xn_ref[...], w_ref[...], preferred_element_type=jnp.float32)
    o_ref[...] = (out + b_ref[...]).astype(o_ref.dtype)


# --------------------------------------------------------------------------- #
# One-time parameter prep (NOT in the per-forward-call path)
# --------------------------------------------------------------------------- #
def prepare_classifier_params(weight, bias, gamma, beta):
    """Fold LayerNorm affine into the linear layer, transpose, pad, bf16-cast.

    weight: (C, D) PyTorch layout; bias: (C,); gamma/beta: (D,) LN affine.
    Returns w_t: (D, Cp) bf16 and b_p: (1, Cp) f32, Cp lane-dense.
    Pad columns are zero so they contribute nothing and are sliced off later.
    """
    C, D = weight.shape
    mult = 256 if C >= 256 else 128           # cleaner MXU N-tiling on v6e/v7x
    Cp = _round_up(max(C, 1), mult)

    w_f32 = weight.T.astype(jnp.float32)                      # (D, C)
    w_scaled = gamma.astype(jnp.float32)[:, None] * w_f32     # fold gamma
    w_t = jnp.zeros((D, Cp), jnp.bfloat16).at[:, :C].set(w_scaled.astype(jnp.bfloat16))

    b_fold = beta.astype(jnp.float32) @ w_f32 + bias.astype(jnp.float32)  # fold beta
    b_p = jnp.zeros((1, Cp), jnp.float32).at[:, :C].set(b_fold)
    return w_t, b_p


# --------------------------------------------------------------------------- #
# Tiling / VMEM sizing
# --------------------------------------------------------------------------- #
def _vmem_config():
    """Generation-aware (budget, limit): v7x has 64 MiB VMEM, v5e/v6e 128 MiB."""
    phys = 64 * 1024 * 1024
    try:
        phys = int(pltpu.get_tpu_info().vmem_capacity_bytes)
    except Exception:
        pass  # conservative default works on every generation
    if phys > 96 * 1024 * 1024:                       # v5e / v6e
        return 56 * 1024 * 1024, 100 * 1024 * 1024
    return 24 * 1024 * 1024, 48 * 1024 * 1024         # v7x-safe


def _pick_tiles(B, D, Cp, x_bytes, out_bytes, budget):
    """Pick (TB, TC) batch/class tiles under the VMEM budget."""
    # Class tiling: whole bf16 weight resident (single-buffered) if it fits in
    # ~half the budget, otherwise stream double-buffered (D, TC) tiles.
    w_budget = budget // 2
    if D * Cp * 2 <= w_budget:
        TC, w_bufs = Cp, 1
    else:
        TC = max(((w_budget // (4 * D)) // 128) * 128, 128)   # 2 bufs, bf16
        TC = min(TC, Cp)
        w_bufs = 2
    weight_bytes = w_bufs * D * TC * 2

    # Batch tiling: double-buffered x/out tiles + bf16 LN scratch per row.
    per_row = 2 * D * x_bytes + 2 * TC * out_bytes + 2 * D
    avail = budget - weight_bytes - 2 * 4 * TC                # bias buffers
    TB = max(avail, per_row) // per_row
    TB = max((TB // 8) * 8, 8)
    TB = min(TB, 1024)
    # v7x megacore: keep >= 4 batch-grid steps so both TensorCores get
    # pipelined work (harmless on single-core generations).
    TB = min(TB, max(_round_up(-(-B // 4), 8), 8))
    TB = min(TB, _round_up(B, 8))
    return int(TB), int(TC)


# --------------------------------------------------------------------------- #
# Forward
# --------------------------------------------------------------------------- #
@functools.partial(jax.jit, static_argnames=("num_classes",))
def classifier_forward(x, w_t, b_p, *, num_classes):
    """x: (B, D); w_t/b_p from prepare_classifier_params (gamma/beta folded)."""
    B, D = x.shape
    Cp = w_t.shape[1]

    budget, vmem_limit = _vmem_config()
    x_bytes = jnp.dtype(x.dtype).itemsize
    TB, TC = _pick_tiles(B, D, Cp, x_bytes, x_bytes, budget)

    grid = (pl.cdiv(B, TB), pl.cdiv(Cp, TC))
    n_c = grid[1]

    # When the weight/bias are grid-invariant (single class tile), don't waste
    # VMEM on a second pipeline buffer for them.
    const_kwargs = dict(pipeline_mode=pl.Buffered(1)) if n_c == 1 else {}

    out = pl.pallas_call(
        classifier_kernel,
        out_shape=jax.ShapeDtypeStruct((B, Cp), x.dtype),
        grid=grid,
        in_specs=[
            pl.BlockSpec((TB, D), lambda i, j: (i, 0)),                 # streamed x
            pl.BlockSpec((D, TC), lambda i, j: (0, j), **const_kwargs),  # weight
            pl.BlockSpec((1, TC), lambda i, j: (0, j), **const_kwargs),  # bias
        ],
        out_specs=pl.BlockSpec((TB, TC), lambda i, j: (i, j)),
        scratch_shapes=[pltpu.VMEM((TB, D), jnp.bfloat16)],  # cached LN result
        compiler_params=pltpu.CompilerParams(
            dimension_semantics=("parallel", "arbitrary"),
            vmem_limit_bytes=vmem_limit,
        ),
    )(x, w_t, b_p)

    # Slice off the lane-dense class padding.
    return out[:, :num_classes]


# --------------------------------------------------------------------------- #
# Pure-JAX reference
# --------------------------------------------------------------------------- #
def reference_forward(x, gamma, beta, weight, bias):
    xf = x.astype(jnp.float32)
    mean = jnp.mean(xf, axis=-1, keepdims=True)
    var = jnp.mean((xf - mean) ** 2, axis=-1, keepdims=True)
    xn = (xf - mean) / jnp.sqrt(var + 1e-6)
    xn = xn * gamma + beta
    return xn @ weight.T + bias


if __name__ == "__main__":
    key = jax.random.PRNGKey(0)
    B, D, C = 8, 32, 16  # batch, input_size, num_classes

    kx, kw, kb, kg, kbe = jax.random.split(key, 5)
    x = jax.random.normal(kx, (B, D), dtype=jnp.float32)

    # Deterministic synthetic parameters (non-trivial LN affine to exercise
    # the gamma/beta fold).
    gamma = 1.0 + 0.1 * jax.random.normal(kg, (D,), dtype=jnp.float32)
    beta = 0.1 * jax.random.normal(kbe, (D,), dtype=jnp.float32)
    bound = 1.0 / jnp.sqrt(jnp.float32(D))
    weight = jax.random.uniform(kw, (C, D), minval=-bound, maxval=bound, dtype=jnp.float32)
    bias = jax.random.uniform(kb, (C,), minval=-bound, maxval=bound, dtype=jnp.float32)

    # One-time prep: fold LN affine, transpose, lane-dense pad, bf16 cast.
    w_t, b_p = prepare_classifier_params(weight, bias, gamma, beta)

    out = classifier_forward(x, w_t, b_p, num_classes=C)
    out = jax.block_until_ready(out)

    ref = reference_forward(x, gamma, beta, weight, bias)
    assert out.shape == (B, C)
    # Tolerance loosened for the bf16 MXU operands (accumulation stays f32).
    assert jnp.allclose(out, ref, atol=5e-2, rtol=5e-2), float(jnp.max(jnp.abs(out - ref)))

    print("KERNEL_OK")
</pallas_src>

<mosaic_0001>
module attributes {stable_mosaic.version = 11 : i64} {
  func.func @classifier_kernel(%arg0: i32, %arg1: i32, %arg2: memref<8x32xf32, #tpu.memory_space<vmem>>, %arg3: memref<32x128xbf16, #tpu.memory_space<vmem>>, %arg4: memref<1x128xf32, #tpu.memory_space<vmem>>, %arg5: memref<8x128xf32, #tpu.memory_space<vmem>>, %arg6: memref<8x32xbf16, #tpu.memory_space<vmem>>) attributes {dimension_semantics = [#tpu.dimension_semantics<parallel>, #tpu.dimension_semantics<arbitrary>], iteration_bounds = array<i64: 1, 1>, scalar_prefetch = 0 : i64, scratch_operands = 1 : i64, tpu.core_type = #tpu.core_type<tc>, window_params = [{transform_indices = @transform_0, window_bounds = array<i64: 8, 32>}, {pipeline_mode = #tpu.pipeline_mode<synchronous>, transform_indices = @transform_1, window_bounds = array<i64: 32, 128>}, {pipeline_mode = #tpu.pipeline_mode<synchronous>, transform_indices = @transform_2, window_bounds = array<i64: 1, 128>}, {transform_indices = @transform_3, window_bounds = array<i64: 8, 128>}]} {
    %c0_i32 = arith.constant 0 : i32
    %0 = arith.cmpi eq, %arg1, %c0_i32 : i32
    %1 = arith.extui %0 : i1 to i32
    %c0_i32_0 = arith.constant 0 : i32
    %2 = arith.cmpi ne, %1, %c0_i32_0 : i32
    scf.if %2 {
      %c0_8 = arith.constant 0 : index
      %c0_9 = arith.constant 0 : index
      %10 = vector.load %arg2[%c0_8, %c0_9] : memref<8x32xf32, #tpu.memory_space<vmem>>, vector<8x32xf32>
      %cst_10 = arith.constant dense<0.000000e+00> : vector<8xf32>
      %11 = vector.multi_reduction <add>, %10, %cst_10 [1] : vector<8x32xf32> to vector<8xf32>
      %12 = vector.shape_cast %11 : vector<8xf32> to vector<8x1xf32>
      %13 = arith.mulf %10, %10 : vector<8x32xf32>
      %cst_11 = arith.constant dense<0.000000e+00> : vector<8xf32>
      %14 = vector.multi_reduction <add>, %13, %cst_11 [1] : vector<8x32xf32> to vector<8xf32>
      %15 = vector.shape_cast %14 : vector<8xf32> to vector<8x1xf32>
      %cst_12 = arith.constant 3.125000e-02 : f32
      %16 = vector.broadcast %cst_12 : f32 to vector<8x1xf32>
      %17 = arith.mulf %12, %16 : vector<8x1xf32>
      %cst_13 = arith.constant 3.125000e-02 : f32
      %18 = vector.broadcast %cst_13 : f32 to vector<8x1xf32>
      %19 = arith.mulf %15, %18 : vector<8x1xf32>
      %20 = arith.mulf %17, %17 : vector<8x1xf32>
      %21 = arith.subf %19, %20 : vector<8x1xf32>
      %cst_14 = arith.constant 0.000000e+00 : f32
      %22 = vector.broadcast %cst_14 : f32 to vector<8x1xf32>
      %23 = arith.maximumf %21, %22 : vector<8x1xf32>
      %24 = vector.broadcast %17 : vector<8x1xf32> to vector<8x32xf32>
      %25 = arith.subf %10, %24 : vector<8x32xf32>
      %cst_15 = arith.constant 9.99999997E-7 : f32
      %26 = vector.broadcast %cst_15 : f32 to vector<8x1xf32>
      %27 = arith.addf %23, %26 : vector<8x1xf32>
      %28 = math.rsqrt %27 : vector<8x1xf32>
      %29 = vector.broadcast %28 : vector<8x1xf32> to vector<8x32xf32>
      %30 = arith.mulf %25, %29 : vector<8x32xf32>
      %31 = arith.truncf %30 : vector<8x32xf32> to vector<8x32xbf16>
      %c0_16 = arith.constant 0 : index
      %c0_17 = arith.constant 0 : index
      %32 = vector.load %arg6[%c0_16, %c0_17] : memref<8x32xbf16, #tpu.memory_space<vmem>>, vector<8x32xbf16>
      tpu.vector_store %arg6[%c0_16, %c0_17], %31 {strides = array<i32>} : memref<8x32xbf16, #tpu.memory_space<vmem>>, vector<8x32xbf16>,
    } else {
    }
    %c0 = arith.constant 0 : index
    %c0_1 = arith.constant 0 : index
    %3 = vector.load %arg6[%c0, %c0_1] : memref<8x32xbf16, #tpu.memory_space<vmem>>, vector<8x32xbf16>
    %c0_2 = arith.constant 0 : index
    %c0_3 = arith.constant 0 : index
    %4 = vector.load %arg3[%c0_2, %c0_3] : memref<32x128xbf16, #tpu.memory_space<vmem>>, vector<32x128xbf16>
    %cst = arith.constant dense<0.000000e+00> : vector<8x128xf32>
    %5 = tpu.matmul %3, %4, %cst {dimension_numbers = #tpu.dot_dimension_numbers<[1], [0], [0], [1], [0, 0, 1, 1], [], []>} : vector<8x32xbf16>, vector<32x128xbf16>, vector<8x128xf32> -> vector<8x128xf32>
    %c0_4 = arith.constant 0 : index
    %c0_5 = arith.constant 0 : index
    %6 = vector.load %arg4[%c0_4, %c0_5] : memref<1x128xf32, #tpu.memory_space<vmem>>, vector<1x128xf32>
    %7 = vector.broadcast %6 : vector<1x128xf32> to vector<8x128xf32>
    %8 = arith.addf %5, %7 : vector<8x128xf32>
    %c0_6 = arith.constant 0 : index
    %c0_7 = arith.constant 0 : index
    %9 = vector.load %arg5[%c0_6, %c0_7] : memref<8x128xf32, #tpu.memory_space<vmem>>, vector<8x128xf32>
    tpu.vector_store %arg5[%c0_6, %c0_7], %8 {strides = array<i32>} : memref<8x128xf32, #tpu.memory_space<vmem>>, vector<8x128xf32>,
    return
  }
  func.func @transform_0(%arg0: i32, %arg1: i32) -> (i32, i32) {
    %c0_i32 = arith.constant 0 : i32
    %c0_i32_0 = arith.constant 0 : i32
    return %arg0, %c0_i32 : i32, i32
  }
  func.func @transform_1(%arg0: i32, %arg1: i32) -> (i32, i32) {
    %c0_i32 = arith.constant 0 : i32
    %c0_i32_0 = arith.constant 0 : i32
    return %c0_i32, %arg1 : i32, i32
  }
  func.func @transform_2(%arg0: i32, %arg1: i32) -> (i32, i32) {
    %c0_i32 = arith.constant 0 : i32
    %c0_i32_0 = arith.constant 0 : i32
    return %c0_i32, %arg1 : i32, i32
  }
  func.func @transform_3(%arg0: i32, %arg1: i32) -> (i32, i32) {
    %c0_i32 = arith.constant 0 : i32
    return %arg0, %arg1 : i32, i32
  }
}

</mosaic_0001>

<llo_original>
// kernel: classifier_forward.1
$region0: #{classifier_forward.1}
  #allocation0 [shape = 'u32[]', space=smem, size = 0x4, offset = 0x4, fixed_abs, tag = 'smem constant byte address 0x4 - core index']
  #allocation1 [shape = 'u32[72,128]{1,0:T(1,128)}', space=vmem, size = 0x9000, scoped, tag = 'internal scratch']
  #allocation2 [shape = 'bf16[8,32]{1,0:T(8,128)(2,1)}', space=vmem, size = 0x800, scoped, tag = 'scratch operand']
  %s0 = inlined_call_operand.hbm [shape: f32[8,32], index: 0, kind: input, shape index: {}]
  %s1 = inlined_call_operand.hbm [shape: bf16[32,128], index: 1, kind: input, shape index: {}]
  %s2 = inlined_call_operand.vmem [shape: f32[1,128], index: 2, kind: input, shape index: {}]
  %s3 = inlined_call_operand.hbm [shape: f32[8,128], index: 3, kind: output, shape index: {}]
  %s4 = sld [smem:[#allocation0]]
  $region34: #{classifier_forward.1} parent=0
    _
  %s6 = ssub.s32 1, %s4
  %s7 = scalar_select 0, %s6, %s4
  $region1: #{classifier_forward.1} parent=0
    #allocation3 [shape = 'u8[4096]{0}', space=vmem, size = 0x1000, scoped, tag = 'input window, operand 0, single buffered']
    #allocation4 [shape = 's32[1]{0}', space=sflag, size = 0x4, scoped, tag = 'scoped memory for classifier_forward.1']
    #allocation5 [shape = 's32[1]{0}', space=sflag, size = 0x4, scoped, tag = 'scoped memory for classifier_forward.1']
    #allocation6 [shape = 'u8[8192]{0}', space=vmem, size = 0x2000, scoped, tag = 'input window, operand 1, single buffered']
    #allocation7 [shape = 's32[1]{0}', space=sflag, size = 0x4, scoped, tag = 'scoped memory for classifier_forward.1']
    #allocation8 [shape = 'u8[4096]{0}', space=vmem, size = 0x1000, scoped, tag = 'output window, operand 0, single buffered']
    %8 = vsyncpa [#allocation4], 0
    %9 = vsyncpa [#allocation7], 0
    %10 = vsyncpa [#allocation5], 0
    // Predicated region
    $region2: #{classifier_forward.1} parent=1 // pred_check
      _
    $region3: #{classifier_forward.1} parent=1 // pred_check_branch
      %12 = sbr.rel (0) target = $region5
    $region4: #{classifier_forward.1} parent=1 // pred_region
      %14 = vsyncadd [#allocation4], 0
      %s16 = sshll.u32 %s0, 4
      %s17 = int_to_ptr.hbm [resolvable:$true] %s16
      %s18 = sshll.u32 [#allocation3], 4
      %s19 = int_to_ptr.vmem [resolvable:$true] %s18
      %21 = dma.hbm_to_vmem [thread:$0]  %s17, 128, %s19, [#allocation4]
    $region5: #{classifier_forward.1} parent=1 // pred_fallthru
      _
    // Predicated region
    $region6: #{classifier_forward.1} parent=1 // pred_check
      _
    $region7: #{classifier_forward.1} parent=1 // pred_check_branch
      %23 = sbr.rel (0) target = $region9
    $region8: #{classifier_forward.1} parent=1 // pred_region
      %25 = vsyncadd [#allocation7], 0
      %s26 = sshll.u32 %s1, 4
      %s27 = int_to_ptr.hbm [resolvable:$true] %s26
      %s28 = sshll.u32 [#allocation6], 4
      %s29 = int_to_ptr.vmem [resolvable:$true] %s28
      %34 = dma.hbm_to_vmem [thread:$0]  %s27, 256, %s29, [#allocation7], 64, 64, 4
    $region9: #{classifier_forward.1} parent=1 // pred_fallthru
      _
    // Predicated region
    $region10: #{classifier_forward.1} parent=1 // pred_check
      _
    $region11: #{classifier_forward.1} parent=1 // pred_check_branch
      %36 = sbr.rel (0) target = $region13
    $region12: #{classifier_forward.1} parent=1 // pred_region
      _
    $region13: #{classifier_forward.1} parent=1 // pred_fallthru
      _
    // Predicated region
    $region14: #{classifier_forward.1} parent=1 // pred_check
      _
    $region15: #{classifier_forward.1} parent=1 // pred_check_branch
      %38 = sbr.rel (0) target = $region17
    $region16: #{classifier_forward.1} parent=1 // pred_region
      %40 = dma.done [#allocation4], 128
    $region17: #{classifier_forward.1} parent=1 // pred_fallthru
      _
    // Predicated region
    $region18: #{classifier_forward.1} parent=1 // pred_check
      _
    $region19: #{classifier_forward.1} parent=1 // pred_check_branch
      %42 = sbr.rel (0) target = $region21
    $region20: #{classifier_forward.1} parent=1 // pred_region
      %44 = dma.done [#allocation7], 256
    $region21: #{classifier_forward.1} parent=1 // pred_fallthru
      _
    %p46 = scmp.eq.s32.totalorder 0, 0
    // Predicated region
    $region22: #{classifier_forward.1} parent=1 // pred_check
      %p47 = pneg %p46
    $region23: #{classifier_forward.1} parent=1 // pred_check_branch
      %49 = sbr.rel (%p47) target = $region25
    $region24: #{classifier_forward.1} parent=1 // pred_region
      %v50 = vld [vmem:[#allocation3] sm:$0xff]
      %vm51 = vcmask 261120
      %v52 = vsel %vm51, %v50, 0.0
      %53 = vadd.xlane.f32.xlu0 %v52
      %v54 = vpop.xlane.xlu0 %53
      %v55 = vmul.f32 %v50, %v50
      %v56 = vsel %vm51, %v55, 0.0
      %57 = vadd.xlane.f32.xlu0 %v56
      %v58 = vpop.xlane.xlu0 %57
      %v59 = vmul.f32 %v54, 0.03125
      %v60 = vmul.f32 %v58, 0.03125
      %v61 = vmul.f32 %v59, %v59
      %v62 = vsub.f32 %v60, %v61
      %v63 = vmax.f32 %v62, 0.0
      %v64 = vsub.f32 %v50, %v59
      %v65 = vadd.f32 %v63, 1e-06
      %v66 = vrsqrt.pop %v65
      %v67 = vmul.f32 %v66, %v65
      %v68 = vmul.f32 %v67, %v66
      %v69 = vmul.f32 0.5, %v68
      %v70 = vsub.f32 1.5, %v69
      %v71 = vmul.f32 %v66, %v70
      %vm72 = vweird.f32 %v65
      %vm73 = vweird.f32 %v66
      %vm74 = vmor %vm72, %vm73
      %v75 = vsel %vm74, %v66, %v71
      %v76 = vmul.f32 %v64, %v75
      %v77 = vpack.c.bf16 %v76, %v76
      %vm78 = vcmask 257024
      %79 = vst.msk [vmem:[#allocation2] sm:$0xf] %vm78, %v77
    $region25: #{classifier_forward.1} parent=1 // pred_fallthru
      _
    %v80 = vld [vmem:[#allocation2] sm:$0xf]
    %v81 = vld [vmem:[#allocation6] sm:$0xf]
    %v82 = vld [vmem:[#allocation6 + $0x4] sm:$0xf]
    %v83 = vld [vmem:[#allocation6 + $0x8] sm:$0xf]
    %v84 = vld [vmem:[#allocation6 + $0xc] sm:$0xf]
    %v85 = vld [vmem:[%s2] sm:$0x1]
    %v87 = vperm.slane %v85, 0
    %v93 = vunpack.c.l.b16 %v81
    %v94 = vunpack.c.l.b16 %v82
    %v95 = vunpack.c.l.b16 %v83
    %v96 = vunpack.c.l.b16 %v84
    %v97 = vpack.c.b16 %v94, %v93
    %v98 = vpack.c.b16 %v96, %v95
    %vm101 = vcmask 261120
    %v103 = vsel %vm101, %v80, 0
    %105 = vmatpush.bf16.msra.mxu0 0
    %106 = vmatpush.bf16.msra.mxu0 0
    %107 = vmatpush.bf16.msra.mxu0 0
    %108 = vmatpush.bf16.msra.mxu0 0
    %109 = vmatpush.bf16.msra.mxu0 0
    %110 = vmatpush.bf16.msra.mxu0 0
    %111 = vmatpush.bf16.msra.mxu0 %v98
    %112 = vmatpush.bf16.msra.mxu0 %v97
    %113 = vmatmul.bf16.gmra.mxu0 %v103
    %v114 = vpop.f32.mrf.mxu0
    %v115 = vadd.f32 %v87, %v114
    %v116 = vpop.f32.mrf.mxu0
    %117 = vdwg.mxu0
    %118 = vst [vmem:[#allocation8] sm:$0xff] %v115
    // Predicated region
    $region26: #{classifier_forward.1} parent=1 // pred_check
      _
    $region27: #{classifier_forward.1} parent=1 // pred_check_branch
      %120 = sbr.rel (0) target = $region29
    $region28: #{classifier_forward.1} parent=1 // pred_region
      %122 = vsyncadd [#allocation5], 0
      %s124 = sshll.u32 [#allocation8], 4
      %s125 = int_to_ptr.vmem [resolvable:$true] %s124
      %s126 = sshll.u32 %s3, 4
      %s127 = int_to_ptr.hbm [resolvable:$true] %s126
      %129 = dma.vmem_to_hbm [thread:$0]  %s125, 128, %s127, [#allocation5]
    $region29: #{classifier_forward.1} parent=1 // pred_fallthru
      _
    // Predicated region
    $region30: #{classifier_forward.1} parent=1 // pred_check
      _
    $region31: #{classifier_forward.1} parent=1 // pred_check_branch
      %131 = sbr.rel (0) target = $region33
    $region32: #{classifier_forward.1} parent=1 // pred_region
      %133 = dma.done [#allocation5], 128
    $region33: #{classifier_forward.1} parent=1 // pred_fallthru
      _
    %134 = vsyncpa [#allocation4], 1
    %135 = vsyncpa [#allocation7], 1
    %136 = vsyncpa [#allocation5], 1

</llo_original>
